<compile_context>
chip_gen: v6e
topology: v6e:2x2x1
jax: 0.10.0
libtpu: 0.0.40
codegen_flags: <defaults>
</compile_context>

<pallas_src>
import functools

import jax
import jax.numpy as jnp
from jax import lax
from jax.experimental import pallas as pl
from jax.experimental.pallas import tpu as pltpu


# ----------------------------------------------------------------------------
# pltpu.roll direction probe (run once, outside jit).
# Returns s such that pltpu.roll(v, (s*k) % L, axis=-1)[..., p] == v[..., (p+k) % L].
# ----------------------------------------------------------------------------
_ROLL_SIGN = None


def _detect_roll_sign():
    global _ROLL_SIGN
    if _ROLL_SIGN is not None:
        return _ROLL_SIGN

    def probe(x_ref, o_ref):
        o_ref[...] = pltpu.roll(x_ref[...], 1, axis=1)

    x = jnp.tile(jnp.arange(128, dtype=jnp.float32)[None, :], (8, 1))
    y = pl.pallas_call(
        probe, out_shape=jax.ShapeDtypeStruct((8, 128), jnp.float32))(x)
    first = float(jax.block_until_ready(y)[0, 0])
    assert first in (127.0, 1.0), f"unexpected pltpu.roll semantics (probe={first})"
    # np.roll semantics: out[i] = v[(i - shift) % L]  ->  out[0] == 127  ->  shift = -k.
    _ROLL_SIGN = -1 if first == 127.0 else 1
    return _ROLL_SIGN


def _round_up(v, m):
    return ((v + m - 1) // m) * m


# ----------------------------------------------------------------------------
# Fused kernel: all layers of (conv3x3 + folded-BN + 2x2 maxpool [+ ReLU on last])
# for the whole batch in one invocation.  Everything is lane-dense (C, H*W).
# ----------------------------------------------------------------------------
def _make_fused_kernel(N, layer_dims, roll_sign):
    n_layers = len(layer_dims)

    def shift_lanes(v, k, lanes):
        """out[:, p] = v[:, (p + k) % lanes], static k (XLU lane rotation)."""
        s = (roll_sign * k) % lanes
        if s == 0:
            return v
        return pltpu.roll(v, s, axis=1)

    def kernel(x_ref, *refs):
        param_refs = refs[:-1]          # (w9, bias) per layer
        o_ref = refs[-1]

        # Per-layer constants, shared across the batch (hoisted out of the image loop):
        #   * 9 tap-validity masks (zero-padding boundaries) from lane iotas,
        #   * the 0/1 pooling-compaction matrix (2x2/2 pool lane gather done on the MXU).
        consts = []
        for li, d in enumerate(layer_dims):
            cin, h, w, lin = d["cin"], d["h"], d["w"], d["lin"]
            lane = lax.broadcasted_iota(jnp.int32, (cin, lin), 1)
            row, col = lane // w, lane % w
            valid = lane < h * w
            masks = []
            for dy in (-1, 0, 1):
                for dx in (-1, 0, 1):
                    masks.append(valid & (row + dy >= 0) & (row + dy < h)
                                 & (col + dx >= 0) & (col + dx < w))
            h2, w2, lout = d["h2"], d["w2"], d["lout"]
            p_idx = lax.broadcasted_iota(jnp.int32, (lin, lout), 0)
            q_idx = lax.broadcasted_iota(jnp.int32, (lin, lout), 1)
            src = (q_idx // w2) * (2 * w) + (q_idx % w2) * 2
            sel = jnp.where((q_idx < h2 * w2) & (p_idx == src), 1.0, 0.0)
            consts.append((masks, sel))

        for n in range(N):                              # static unroll over the batch
            y = x_ref[n].astype(jnp.float32)            # (Cin, H*W), spatial on lanes
            for li, d in enumerate(layer_dims):
                w_ref = param_refs[2 * li]              # (9, Cout, Cin), BN scale folded
                b_ref = param_refs[2 * li + 1]          # (Cout, 1), conv bias + BN folded
                masks, sel = consts[li]
                w, lin = d["w"], d["lin"]

                # conv3x3 (padding=1): 9 lane-rolled, masked (Cout,Cin)@(Cin,H*W) matmuls.
                acc = None
                t = 0
                for dy in (-1, 0, 1):
                    for dx in (-1, 0, 1):
                        tap = shift_lanes(y, dy * w + dx, lin)
                        tap = jnp.where(masks[t], tap, 0.0)
                        part = jnp.dot(w_ref[t], tap,
                                       preferred_element_type=jnp.float32)
                        acc = part if acc is None else acc + part
                        t += 1
                acc = acc + b_ref[...]                  # folded BatchNorm (eval) + conv bias

                # 2x2 stride-2 max-pool: two lane-shift maxes + MXU compaction matmul.
                m = jnp.maximum(acc, shift_lanes(acc, 1, lin))      # max over j, j+1
                m = jnp.maximum(m, shift_lanes(m, w, lin))          # max over i, i+1
                y = jnp.dot(m, sel, preferred_element_type=jnp.float32)  # (Cout, lout)

                if li == n_layers - 1:                  # activation only on last block
                    y = jnp.maximum(y, 0.0)

            o_ref[n] = y.astype(o_ref.dtype)

    return kernel


# ----------------------------------------------------------------------------
# Wrapper: full CNN_ARCHITECTURE.forward equivalent, NCHW in / NCHW out.
# No transposes — only free reshapes at the HBM level.
# ----------------------------------------------------------------------------
def cnn_forward(x_nchw, params, *, max_pooling=True, roll_sign=None):
    assert max_pooling, "only the max_pooling=True instance is implemented"
    # TODO(synk): max_pooling=False variant of build_model() is not implemented here.
    if roll_sign is None:
        roll_sign = _detect_roll_sign()     # must be warmed outside jit tracing

    N, cin0, H, W = x_nchw.shape
    n_layers = len(params)
    chans = [cin0] + [int(p["w"].shape[-1]) for p in params]

    # Per-layer geometry.  lin/lout are lane-container widths (multiples of 128 for
    # intermediates; the final output is stored at its exact width Ho*Wo).
    layer_dims = []
    h, w = H, W
    for li in range(n_layers):
        h2, w2 = h // 2, w // 2
        lin = _round_up(h * w, 128)
        lout = (h2 * w2) if li == n_layers - 1 else _round_up(h2 * w2, 128)
        layer_dims.append(dict(cin=chans[li], cout=chans[li + 1],
                               h=h, w=w, h2=h2, w2=w2, lin=lin, lout=lout))
        h, w = h2, w2
    assert layer_dims[0]["lin"] == H * W, "H*W must be a multiple of 128 for this kernel"

    # NCHW -> (N, C, H*W): free reshape; channels on sublanes, spatial on lanes.
    x_flat = x_nchw.reshape(N, cin0, H * W)

    inputs = [x_flat]
    flops = 0
    bytes_accessed = x_flat.size * 4
    for li, p in enumerate(params):
        cin, cout = chans[li], chans[li + 1]
        d = layer_dims[li]
        # HWIO (3,3,Cin,Cout) -> (9, Cout, Cin); fold the BN scale into the weights.
        w9 = jnp.transpose(p["w"], (0, 1, 3, 2)).reshape(9, cout, cin)
        w9 = (w9 * p["scale"][None, :, None]).astype(jnp.float32)
        bias = p["bias"].reshape(cout, 1).astype(jnp.float32)
        inputs += [w9, bias]
        bytes_accessed += (w9.size + bias.size) * 4
        flops += 2 * N * (9 * cin * cout * d["h"] * d["w"]     # conv taps
                          + cout * d["lin"] * d["lout"])       # pooling compaction
    out_lanes = layer_dims[-1]["lout"]
    bytes_accessed += N * chans[-1] * out_lanes * 4

    kernel = _make_fused_kernel(N, layer_dims, roll_sign)
    out = pl.pallas_call(
        kernel,
        out_shape=jax.ShapeDtypeStruct((N, chans[-1], out_lanes), x_nchw.dtype),
        cost_estimate=pl.CostEstimate(flops=flops, transcendentals=0,
                                      bytes_accessed=bytes_accessed),
    )(*inputs)
    # (N, Cout, Ho*Wo) -> NCHW: free reshape.
    return out.reshape(N, chans[-1], layer_dims[-1]["h2"], layer_dims[-1]["w2"])


# ----------------------------------------------------------------------------
# Deterministic parameter construction (synthetic init, BN folded, eval mode).
# ----------------------------------------------------------------------------
def build_params(key, input_size, hidden_layers, eps=1e-5):
    params = []
    cin = input_size
    for cout in hidden_layers:
        key, kw, kb, kg, kbe, km, kv = jax.random.split(key, 7)
        w = jax.random.normal(kw, (3, 3, cin, cout), jnp.float32) * 0.1   # HWIO
        conv_b = jax.random.normal(kb, (cout,), jnp.float32) * 0.05
        gamma = 1.0 + 0.1 * jax.random.normal(kg, (cout,), jnp.float32)
        beta = 0.1 * jax.random.normal(kbe, (cout,), jnp.float32)
        run_mean = 0.1 * jax.random.normal(km, (cout,), jnp.float32)
        run_var = 1.0 + jnp.abs(jax.random.normal(kv, (cout,), jnp.float32)) * 0.2
        # Fold BN (eval mode) + conv bias:  y = (conv + b - mean)/sqrt(var+eps)*gamma + beta
        scale = gamma / jnp.sqrt(run_var + eps)
        bias = (conv_b - run_mean) * scale + beta
        params.append(dict(w=w, scale=scale, bias=bias,
                           conv_b=conv_b, gamma=gamma, beta=beta,
                           mean=run_mean, var=run_var))
        cin = cout
    return params


# ----------------------------------------------------------------------------
# Pure-JAX reference (mirrors the PyTorch forward semantics, eval mode).
# ----------------------------------------------------------------------------
def reference_forward(x_nchw, params, *, max_pooling=True, eps=1e-5):
    x = jnp.transpose(x_nchw, (0, 2, 3, 1))  # NHWC
    n_layers = len(params)
    for i, p in enumerate(params):
        y = lax.conv_general_dilated(
            x, p["w"], window_strides=(1, 1), padding="SAME",
            dimension_numbers=("NHWC", "HWIO", "NHWC"),
            precision=lax.Precision.HIGHEST) + p["conv_b"]
        y = (y - p["mean"]) / jnp.sqrt(p["var"] + eps) * p["gamma"] + p["beta"]
        if max_pooling:
            y = lax.reduce_window(y, -jnp.inf, lax.max,
                                  (1, 2, 2, 1), (1, 2, 2, 1), "VALID")
        if i == n_layers - 1:
            y = jnp.maximum(y, 0.0)
        x = y
    return jnp.transpose(x, (0, 3, 1, 2))


if __name__ == "__main__":
    # Shapes consistent with the module: batch=2, input channels=4, 16x16 images.
    input_size = 4
    hidden_layers = [8, 16]
    key = jax.random.PRNGKey(0)
    key, kx = jax.random.split(key)
    x = jax.random.normal(kx, (2, input_size, 16, 16), jnp.float32)  # NCHW input

    params = build_params(key, input_size, hidden_layers)

    roll_sign = _detect_roll_sign()          # one tiny probe kernel, outside jit
    fwd = jax.jit(functools.partial(cnn_forward, max_pooling=True, roll_sign=roll_sign))
    out = jax.block_until_ready(fwd(x, params))

    ref = jax.block_until_ready(reference_forward(x, params, max_pooling=True))
    assert out.shape == (2, hidden_layers[-1], 4, 4), out.shape
    err = float(jnp.max(jnp.abs(out - ref)))
    assert bool(jnp.allclose(out, ref, atol=1e-4, rtol=1e-4)), f"max |err| = {err}"

    # TODO(synk): nn.Dropout is skipped (drop_prob=0.0 -> PyTorch never builds the layer);
    # BatchNorm2d uses eval-mode running statistics folded into the conv weights/bias.
    print("KERNEL_OK")
</pallas_src>

<mosaic_0001>
module attributes {stable_mosaic.version = 11 : i64} {
  func.func @probe(%arg0: memref<8x128xf32, #tpu.memory_space<vmem>>, %arg1: memref<8x128xf32, #tpu.memory_space<vmem>>) attributes {dimension_semantics = [], scalar_prefetch = 0 : i64, scratch_operands = 0 : i64, tpu.core_type = #tpu.core_type<tc>} {
    %c0 = arith.constant 0 : index
    %c0_0 = arith.constant 0 : index
    %0 = vector.load %arg0[%c0, %c0_0] : memref<8x128xf32, #tpu.memory_space<vmem>>, vector<8x128xf32>
    %c1_i32 = arith.constant 1 : i32
    %1 = tpu.dynamic_rotate %0 by %c1_i32 dim 1 : vector<8x128xf32>, i32 -> vector<8x128xf32>
    %c0_1 = arith.constant 0 : index
    %c0_2 = arith.constant 0 : index
    %2 = vector.load %arg1[%c0_1, %c0_2] : memref<8x128xf32, #tpu.memory_space<vmem>>, vector<8x128xf32>
    tpu.vector_store %arg1[%c0_1, %c0_2], %1 {strides = array<i32>} : memref<8x128xf32, #tpu.memory_space<vmem>>, vector<8x128xf32>,
    return
  }
}

</mosaic_0001>

<llo_original>
// kernel: tpu_custom_call.1
$region0: #{tpu_custom_call.1}
  #allocation0 [shape = 'u32[]', space=smem, size = 0x4, offset = 0x4, fixed_abs, tag = 'smem constant byte address 0x4 - core index']
  #allocation1 [shape = 'u32[144,128]{1,0:T(1,128)}', space=vmem, size = 0x12000, scoped, tag = 'internal scratch']
  %s0 = inlined_call_operand.hbm [shape: f32[8,128], index: 0, kind: input, shape index: {}]
  %s1 = inlined_call_operand.hbm [shape: f32[8,128], index: 1, kind: output, shape index: {}]
  %s2 = sld [smem:[#allocation0]]
  $region18: #{tpu_custom_call.1} parent=0
    _
  %s4 = ssub.s32 1, %s2
  %s5 = scalar_select 0, %s4, %s2
  $region1: #{tpu_custom_call.1} parent=0
    #allocation2 [shape = 'u8[4096]{0}', space=vmem, size = 0x1000, scoped, tag = 'input window, operand 0, single buffered']
    #allocation3 [shape = 's32[1]{0}', space=sflag, size = 0x4, scoped, tag = 'scoped memory for tpu_custom_call.1']
    #allocation4 [shape = 's32[1]{0}', space=sflag, size = 0x4, scoped, tag = 'scoped memory for tpu_custom_call.1']
    #allocation5 [shape = 'u8[4096]{0}', space=vmem, size = 0x1000, scoped, tag = 'output window, operand 0, single buffered']
    %6 = vsyncpa [#allocation3], 0
    %7 = vsyncpa [#allocation4], 0
    // Predicated region
    $region2: #{tpu_custom_call.1} parent=1 // pred_check
      _
    $region3: #{tpu_custom_call.1} parent=1 // pred_check_branch
      %9 = sbr.rel (0) target = $region5
    $region4: #{tpu_custom_call.1} parent=1 // pred_region
      %s11 = ssub.s32 128, 128
      %12 = vsyncadd [#allocation3], %s11
      %s14 = sshll.u32 [#allocation2], 4
      %s15 = int_to_ptr.vmem [resolvable:$true] %s14
      %17 = dma.hbm_to_vmem [thread:$0]  %s0, 128, %s15, [#allocation3]
    $region5: #{tpu_custom_call.1} parent=1 // pred_fallthru
      _
    // Predicated region
    $region6: #{tpu_custom_call.1} parent=1 // pred_check
      _
    $region7: #{tpu_custom_call.1} parent=1 // pred_check_branch
      %19 = sbr.rel (0) target = $region9
    $region8: #{tpu_custom_call.1} parent=1 // pred_region
      %20 = dma.done [#allocation3], 128
    $region9: #{tpu_custom_call.1} parent=1 // pred_fallthru
      _
    %v21 = vld [vmem:[#allocation2] sm:$0xff]
    %22 = vrot.lane.b32.xlu0 %v21, 1
    %v23 = vpop.permute.xlu0 %22
    %24 = vst [vmem:[#allocation5] sm:$0xff] %v23
    // Predicated region
    $region10: #{tpu_custom_call.1} parent=1 // pred_check
      _
    $region11: #{tpu_custom_call.1} parent=1 // pred_check_branch
      %26 = sbr.rel (0) target = $region13
    $region12: #{tpu_custom_call.1} parent=1 // pred_region
      %s28 = ssub.s32 128, 128
      %29 = vsyncadd [#allocation4], %s28
      %s31 = sshll.u32 [#allocation5], 4
      %s32 = int_to_ptr.vmem [resolvable:$true] %s31
      %34 = dma.vmem_to_hbm [thread:$0]  %s32, 128, %s1, [#allocation4]
    $region13: #{tpu_custom_call.1} parent=1 // pred_fallthru
      _
    // Predicated region
    $region14: #{tpu_custom_call.1} parent=1 // pred_check
      _
    $region15: #{tpu_custom_call.1} parent=1 // pred_check_branch
      %36 = sbr.rel (0) target = $region17
    $region16: #{tpu_custom_call.1} parent=1 // pred_region
      %37 = dma.done [#allocation4], 128
    $region17: #{tpu_custom_call.1} parent=1 // pred_fallthru
      _
    %38 = vsyncpa [#allocation3], 1
    %39 = vsyncpa [#allocation4], 1

</llo_original>
